<compile_context>
chip_gen: v5e
topology: v5e:2x2
jax: 0.10.0
libtpu: 0.0.40
codegen_flags: <defaults>
</compile_context>

<pallas_src>
import jax
import jax.numpy as jnp
from jax.experimental import pallas as pl
from jax.experimental.pallas import tpu as pltpu


# ---------------------------------------------------------------- kernels ---

def _xw_kernel(x_ref, w_ref, o_ref):
    """XW = X_tile @ W  (bf16 in, f32 accumulate, bf16 out)."""
    o_ref[...] = jnp.dot(
        x_ref[...], w_ref[...], preferred_element_type=jnp.float32
    ).astype(o_ref.dtype)


def _gcn_layer_kernel(a_ref, xw_ref, b_ref, wn_ref, o_ref, acc_ref):
    """acc += A_blk @ XW_blk; on last K step: H = relu(acc + b); out = H @ W_next."""
    k = pl.program_id(1)

    @pl.when(k == 0)
    def _():
        acc_ref[...] = jnp.zeros_like(acc_ref)

    acc_ref[...] += jnp.dot(
        a_ref[...], xw_ref[...], preferred_element_type=jnp.float32
    )

    @pl.when(k == pl.num_programs(1) - 1)
    def _():
        h = jnp.maximum(acc_ref[...] + b_ref[...], 0.0).astype(wn_ref.dtype)
        o_ref[...] = jnp.dot(
            h, wn_ref[...], preferred_element_type=jnp.float32
        ).astype(o_ref.dtype)


def _gcn_final_kernel(a_ref, xw_ref, b_ref, wo_ref, bo_ref, o_ref, acc_ref):
    """acc += A_blk @ XW_blk; on last K step: H = relu(acc + b); out = H @ Wo + bo."""
    k = pl.program_id(1)

    @pl.when(k == 0)
    def _():
        acc_ref[...] = jnp.zeros_like(acc_ref)

    acc_ref[...] += jnp.dot(
        a_ref[...], xw_ref[...], preferred_element_type=jnp.float32
    )

    @pl.when(k == pl.num_programs(1) - 1)
    def _():
        h = jnp.maximum(acc_ref[...] + b_ref[...], 0.0).astype(wo_ref.dtype)
        o_ref[...] = (
            jnp.dot(h, wo_ref[...], preferred_element_type=jnp.float32)
            + bo_ref[...]
        )


# ----------------------------------------------------------- tiling plan ----

def _round_up(x, m):
    return ((x + m - 1) // m) * m


def _pad2(x, rows, cols):
    r, c = x.shape
    return jnp.pad(x, ((0, rows - r), (0, cols - c)))


def _pick_k_tile(n_pad, tile, a_col_tile):
    """Largest K tile <= a_col_tile that is a multiple of `tile` and divides n_pad."""
    if n_pad <= a_col_tile:
        return n_pad                       # single K step (also covers tiny N)
    k = max(tile, a_col_tile - (a_col_tile % tile))
    while n_pad % k != 0:
        k -= tile                          # terminates: tile divides n_pad
    return k


def plan_tiling(n, *, row_tile=512, a_col_tile=2048):
    """Returns (tile, n_pad, tk).  Sweep row_tile / a_col_tile per chip."""
    tile = min(row_tile, _round_up(n, 8))      # row tile (multiple of 8 sublanes)
    n_pad = _round_up(n, tile)
    tk = _pick_k_tile(n_pad, tile, a_col_tile)
    return tile, n_pad, tk


def _vmem_limit_bytes(tile, tk, hp, cp):
    """Explicit scoped-VMEM budget sized from the actual working set."""
    buf = 2                                           # default double-buffering
    a_b = tile * tk * 2 * buf                         # A stripe (bf16)
    xw_b = tk * hp * 2 * buf                          # XW K-block (bf16)
    w_b = (hp * hp * 2 + hp * cp * 2) * buf           # weight blocks (bf16)
    bias_b = (2 * hp + cp) * 4 * buf                  # biases (f32)
    out_b = max(tile * hp * 2, tile * cp * 4) * buf   # output tile
    acc_b = tile * hp * 4                             # f32 accumulator scratch
    need = int((a_b + xw_b + w_b + bias_b + out_b + acc_b) * 1.25) + (2 << 20)
    # Floor at 32 MiB (never stricter than defaults), cap at 64 MiB (v7x-safe).
    return min(max(need, 32 << 20), 64 << 20)


def prepare_adjacency(a_hat, n_pad, dtype=jnp.bfloat16):
    """Pad + cast A_hat ONCE (reuse across forward calls; A is static).

    dtype=jnp.float32 keeps full precision on the degree normalization;
    on v7x jnp.float8_e4m3fn halves the dominant HBM stream (validate accuracy)."""
    return _pad2(a_hat, n_pad, n_pad).astype(dtype)


# ---------------------------------------------------------------- wrapper ---

def embedding_graph_forward(a_p, embedding, w1, b1, w2, b2, w_out, b_out,
                            *, row_tile=512, a_col_tile=2048):
    """Full EmbeddingGraph forward.

    a_p: adjacency already padded to (n_pad, n_pad) and cast (prepare_adjacency
         with the same tiling plan).  Returns (node_num, num_class) f32 logits.
    """
    n, h = embedding.shape
    c = w_out.shape[1]

    hp = _round_up(h, 128)                        # lane-dense hidden dim
    cp = _round_up(c, 128)                        # lane-dense class dim
    tile, n_pad, tk = plan_tiling(n, row_tile=row_tile, a_col_tile=a_col_tile)
    assert a_p.shape == (n_pad, n_pad), (
        "a_p must come from prepare_adjacency() with the same tiling plan")

    rows, ksteps = n_pad // tile, n_pad // tk

    # bf16 matmul operands, f32 biases (bias-add / relu stay in f32).
    x_p = _pad2(embedding, n_pad, hp).astype(jnp.bfloat16)
    w1_p = _pad2(w1, hp, hp).astype(jnp.bfloat16)
    w2_p = _pad2(w2, hp, hp).astype(jnp.bfloat16)
    wo_p = _pad2(w_out, hp, cp).astype(jnp.bfloat16)
    b1_p = _pad2(b1, 1, hp).astype(jnp.float32)
    b2_p = _pad2(b2, 1, hp).astype(jnp.float32)
    bo_p = _pad2(b_out, 1, cp).astype(jnp.float32)

    vmem_limit = _vmem_limit_bytes(tile, tk, hp, cp)
    params_1d = pltpu.CompilerParams(
        dimension_semantics=("parallel",), vmem_limit_bytes=vmem_limit)
    params_2d = pltpu.CompilerParams(
        dimension_semantics=("parallel", "arbitrary"),
        vmem_limit_bytes=vmem_limit)

    # --- 1) XW1 = X @ W1  (row-tiled over nodes) -----------------------------
    row_h = pl.BlockSpec((tile, hp), lambda i: (i, 0))
    xw1 = pl.pallas_call(
        _xw_kernel,
        out_shape=jax.ShapeDtypeStruct((n_pad, hp), jnp.bfloat16),
        grid=(rows,),
        in_specs=[row_h, pl.BlockSpec((hp, hp), lambda i: (0, 0))],
        out_specs=row_h,
        compiler_params=params_1d,
    )(x_p, w1_p)

    # --- shared specs for the two aggregation kernels -------------------------
    a_spec = pl.BlockSpec((tile, tk), lambda i, k: (i, k))    # A stripe, K-tiled
    xw_spec = pl.BlockSpec((tk, hp), lambda i, k: (k, 0))     # matching XW K-block
    const = lambda shape: pl.BlockSpec(shape, lambda i, k: (0, 0))
    out_h = pl.BlockSpec((tile, hp), lambda i, k: (i, 0))
    out_c = pl.BlockSpec((tile, cp), lambda i, k: (i, 0))
    acc_scratch = pltpu.VMEM((tile, hp), jnp.float32)

    # --- 2) H1 = relu(A @ XW1 + b1);  XW2 = H1 @ W2 ---------------------------
    # NOTE: padded rows (>= n) of xw2 hold relu(b1) @ W2 != 0; harmless because
    # A_hat's padded columns are zero — never read the padded region directly.
    xw2 = pl.pallas_call(
        _gcn_layer_kernel,
        out_shape=jax.ShapeDtypeStruct((n_pad, hp), jnp.bfloat16),
        grid=(rows, ksteps),
        in_specs=[a_spec, xw_spec, const((1, hp)), const((hp, hp))],
        out_specs=out_h,
        scratch_shapes=[acc_scratch],
        compiler_params=params_2d,
    )(a_p, xw1, b1_p, w2_p)

    # --- 3) H2 = relu(A @ XW2 + b2);  OUT = H2 @ Wo + bo  (lane-dense padded C)
    out_p = pl.pallas_call(
        _gcn_final_kernel,
        out_shape=jax.ShapeDtypeStruct((n_pad, cp), jnp.float32),
        grid=(rows, ksteps),
        in_specs=[a_spec, xw_spec, const((1, hp)), const((hp, cp)), const((1, cp))],
        out_specs=out_c,
        scratch_shapes=[acc_scratch],
        compiler_params=params_2d,
    )(a_p, xw2, b2_p, wo_p, bo_p)

    return out_p[:n, :c]


# ------------------------------------------------------------------- glue ---

def build_gcn_adjacency(edge_index, node_num):
    """Dense D^-1/2 (A + I) D^-1/2, matching PyG gcn_norm(add_self_loops=True).

    Note: assumes edge_index has no duplicate edges (duplicates double-counted,
    same as PyG with unit edge weights).  Built once in plain JAX (scatter-add)."""
    src, dst = edge_index[0], edge_index[1]
    a = jnp.zeros((node_num, node_num), jnp.float32)
    a = a.at[dst, src].add(1.0)                    # aggregate source -> target
    a = a + jnp.eye(node_num, dtype=jnp.float32)   # self loops
    deg = a.sum(axis=1)
    d_inv_sqrt = jnp.where(deg > 0, 1.0 / jnp.sqrt(deg), 0.0)
    return d_inv_sqrt[:, None] * a * d_inv_sqrt[None, :]


def reference_forward(a_hat, embedding, w1, b1, w2, b2, w_out, b_out):
    x = embedding
    x = jnp.maximum(a_hat @ (x @ w1) + b1, 0.0)
    x = jnp.maximum(a_hat @ (x @ w2) + b2, 0.0)
    return x @ w_out + b_out


if __name__ == "__main__":
    node_num, hidden_dim, num_class = 16, 32, 4

    key = jax.random.PRNGKey(0)
    k_emb, k_w1, k_w2, k_wo, k_bo = jax.random.split(key, 5)

    # Parameters (deterministic synthetic init; shapes from __init__).
    embedding = jax.random.normal(k_emb, (node_num, hidden_dim), jnp.float32)
    w1 = jax.random.normal(k_w1, (hidden_dim, hidden_dim), jnp.float32) * 0.1
    b1 = jnp.zeros((1, hidden_dim), jnp.float32)   # GCNConv bias init = zeros
    w2 = jax.random.normal(k_w2, (hidden_dim, hidden_dim), jnp.float32) * 0.1
    b2 = jnp.zeros((1, hidden_dim), jnp.float32)
    w_out = jax.random.normal(k_wo, (hidden_dim, num_class), jnp.float32) * 0.1
    b_out = jax.random.normal(k_bo, (1, num_class), jnp.float32) * 0.1

    # Deterministic small graph: bidirectional ring over node_num nodes.
    src = jnp.arange(node_num, dtype=jnp.int32)
    dst = (src + 1) % node_num
    edge_index = jnp.stack([jnp.concatenate([src, dst]),
                            jnp.concatenate([dst, src])], axis=0)   # (2, 2*N)

    a_hat = build_gcn_adjacency(edge_index, node_num)

    # Pad + cast A_hat ONCE (static across forward calls); same tiling plan
    # as the forward.
    _, n_pad, _ = plan_tiling(node_num)
    a_p = prepare_adjacency(a_hat, n_pad)          # bf16, padded

    out = embedding_graph_forward(a_p, embedding, w1, b1, w2, b2, w_out, b_out)
    out = jax.block_until_ready(out)

    # f32 reference; tolerance loosened for bf16 matmul inputs (f32 accumulate).
    ref = reference_forward(a_hat, embedding, w1, b1, w2, b2, w_out, b_out)
    assert out.shape == (node_num, num_class)
    assert jnp.allclose(out, ref, atol=5e-2, rtol=5e-2), (
        float(jnp.max(jnp.abs(out - ref))))

    print("KERNEL_OK")
</pallas_src>

<mosaic_0001>
module attributes {stable_mosaic.version = 11 : i64} {
  func.func @_xw_kernel(%arg0: i32, %arg1: memref<16x128xbf16, #tpu.memory_space<vmem>>, %arg2: memref<128x128xbf16, #tpu.memory_space<vmem>>, %arg3: memref<16x128xbf16, #tpu.memory_space<vmem>>) attributes {dimension_semantics = [#tpu.dimension_semantics<parallel>], iteration_bounds = array<i64: 1>, scalar_prefetch = 0 : i64, scratch_operands = 0 : i64, tpu.core_type = #tpu.core_type<tc>, window_params = [{transform_indices = @transform_0, window_bounds = array<i64: 16, 128>}, {pipeline_mode = #tpu.pipeline_mode<synchronous>, transform_indices = @transform_1, window_bounds = array<i64: 128, 128>}, {transform_indices = @transform_2, window_bounds = array<i64: 16, 128>}]} {
    %c0 = arith.constant 0 : index
    %c0_0 = arith.constant 0 : index
    %0 = vector.load %arg1[%c0, %c0_0] : memref<16x128xbf16, #tpu.memory_space<vmem>>, vector<16x128xbf16>
    %c0_1 = arith.constant 0 : index
    %c0_2 = arith.constant 0 : index
    %1 = vector.load %arg2[%c0_1, %c0_2] : memref<128x128xbf16, #tpu.memory_space<vmem>>, vector<128x128xbf16>
    %cst = arith.constant dense<0.000000e+00> : vector<16x128xf32>
    %2 = tpu.matmul %0, %1, %cst {dimension_numbers = #tpu.dot_dimension_numbers<[1], [0], [0], [1], [0, 0, 1, 1], [], []>} : vector<16x128xbf16>, vector<128x128xbf16>, vector<16x128xf32> -> vector<16x128xf32>
    %3 = arith.truncf %2 : vector<16x128xf32> to vector<16x128xbf16>
    %c0_3 = arith.constant 0 : index
    %c0_4 = arith.constant 0 : index
    %4 = vector.load %arg3[%c0_3, %c0_4] : memref<16x128xbf16, #tpu.memory_space<vmem>>, vector<16x128xbf16>
    tpu.vector_store %arg3[%c0_3, %c0_4], %3 {strides = array<i32>} : memref<16x128xbf16, #tpu.memory_space<vmem>>, vector<16x128xbf16>,
    return
  }
  func.func @transform_0(%arg0: i32) -> (i32, i32) {
    %c0_i32 = arith.constant 0 : i32
    %c0_i32_0 = arith.constant 0 : i32
    return %arg0, %c0_i32 : i32, i32
  }
  func.func @transform_1(%arg0: i32) -> (i32, i32) {
    %c0_i32 = arith.constant 0 : i32
    %c0_i32_0 = arith.constant 0 : i32
    %c0_i32_1 = arith.constant 0 : i32
    return %c0_i32, %c0_i32_0 : i32, i32
  }
  func.func @transform_2(%arg0: i32) -> (i32, i32) {
    %c0_i32 = arith.constant 0 : i32
    %c0_i32_0 = arith.constant 0 : i32
    return %arg0, %c0_i32 : i32, i32
  }
}

</mosaic_0001>

<llo_original>
// kernel: tpu_custom_call.1
$region0: #{tpu_custom_call.1}
  #allocation0 [shape = 'u32[]', space=smem, size = 0x4, offset = 0x4, fixed_abs, tag = 'smem constant byte address 0x4 - core index']
  #allocation1 [shape = 'u32[72,128]{1,0:T(1,128)}', space=vmem, size = 0x9000, scoped, tag = 'internal scratch']
  %s0 = inlined_call_operand.hbm [shape: bf16[16,128], index: 0, kind: input, shape index: {}]
  %s1 = inlined_call_operand.hbm [shape: bf16[128,128], index: 1, kind: input, shape index: {}]
  %s2 = inlined_call_operand.hbm [shape: bf16[16,128], index: 2, kind: output, shape index: {}]
  %s3 = sld [smem:[#allocation0]]
  $region26: #{tpu_custom_call.1} parent=0
    _
  %s5 = ssub.s32 1, %s3
  %s6 = scalar_select 0, %s5, %s3
  $region1: #{tpu_custom_call.1} parent=0
    #allocation2 [shape = 'u8[4096]{0}', space=vmem, size = 0x1000, scoped, tag = 'input window, operand 0, single buffered']
    #allocation3 [shape = 's32[1]{0}', space=sflag, size = 0x4, scoped, tag = 'scoped memory for tpu_custom_call.1']
    #allocation4 [shape = 's32[1]{0}', space=sflag, size = 0x4, scoped, tag = 'scoped memory for tpu_custom_call.1']
    #allocation5 [shape = 'u8[32768]{0}', space=vmem, size = 0x8000, scoped, tag = 'input window, operand 1, single buffered']
    #allocation6 [shape = 's32[1]{0}', space=sflag, size = 0x4, scoped, tag = 'scoped memory for tpu_custom_call.1']
    #allocation7 [shape = 'u8[4096]{0}', space=vmem, size = 0x1000, scoped, tag = 'output window, operand 0, single buffered']
    %7 = vsyncpa [#allocation3], 0
    %8 = vsyncpa [#allocation6], 0
    %9 = vsyncpa [#allocation4], 0
    // Predicated region
    $region2: #{tpu_custom_call.1} parent=1 // pred_check
      _
    $region3: #{tpu_custom_call.1} parent=1 // pred_check_branch
      %11 = sbr.rel (0) target = $region5
    $region4: #{tpu_custom_call.1} parent=1 // pred_region
      %13 = vsyncadd [#allocation3], 0
      %s14 = sshll.u32 %s0, 4
      %s15 = int_to_ptr.hbm [resolvable:$true] %s14
      %s16 = sshll.u32 [#allocation2], 4
      %s17 = int_to_ptr.vmem [resolvable:$true] %s16
      %22 = dma.hbm_to_vmem [thread:$0]  %s15, 128, %s17, [#allocation3], 64, 64, 4
    $region5: #{tpu_custom_call.1} parent=1 // pred_fallthru
      _
    // Predicated region
    $region6: #{tpu_custom_call.1} parent=1 // pred_check
      _
    $region7: #{tpu_custom_call.1} parent=1 // pred_check_branch
      %24 = sbr.rel (0) target = $region9
    $region8: #{tpu_custom_call.1} parent=1 // pred_region
      %26 = vsyncadd [#allocation6], 0
      %s27 = sshll.u32 %s1, 4
      %s28 = int_to_ptr.hbm [resolvable:$true] %s27
      %s29 = sshll.u32 [#allocation5], 4
      %s30 = int_to_ptr.vmem [resolvable:$true] %s29
      %35 = dma.hbm_to_vmem [thread:$0]  %s28, 1024, %s30, [#allocation6], 64, 64, 4
    $region9: #{tpu_custom_call.1} parent=1 // pred_fallthru
      _
    // Predicated region
    $region10: #{tpu_custom_call.1} parent=1 // pred_check
      _
    $region11: #{tpu_custom_call.1} parent=1 // pred_check_branch
      %37 = sbr.rel (0) target = $region13
    $region12: #{tpu_custom_call.1} parent=1 // pred_region
      %39 = dma.done [#allocation3], 128
    $region13: #{tpu_custom_call.1} parent=1 // pred_fallthru
      _
    // Predicated region
    $region14: #{tpu_custom_call.1} parent=1 // pred_check
      _
    $region15: #{tpu_custom_call.1} parent=1 // pred_check_branch
      %41 = sbr.rel (0) target = $region17
    $region16: #{tpu_custom_call.1} parent=1 // pred_region
      %43 = dma.done [#allocation6], 1024
    $region17: #{tpu_custom_call.1} parent=1 // pred_fallthru
      _
    %v44 = vld [vmem:[#allocation2] sm:$0xf]
    %v45 = vld [vmem:[#allocation2 + $0x4] sm:$0xf]
    %v46 = vld [vmem:[#allocation5] sm:$0xf]
    %v47 = vld [vmem:[#allocation5 + $0x4] sm:$0xf]
    %v48 = vld [vmem:[#allocation5 + $0x8] sm:$0xf]
    %v49 = vld [vmem:[#allocation5 + $0xc] sm:$0xf]
    %v50 = vld [vmem:[#allocation5 + $0x10] sm:$0xf]
    %v51 = vld [vmem:[#allocation5 + $0x14] sm:$0xf]
    %v52 = vld [vmem:[#allocation5 + $0x18] sm:$0xf]
    %v53 = vld [vmem:[#allocation5 + $0x1c] sm:$0xf]
    %v54 = vld [vmem:[#allocation5 + $0x20] sm:$0xf]
    %v55 = vld [vmem:[#allocation5 + $0x24] sm:$0xf]
    %v56 = vld [vmem:[#allocation5 + $0x28] sm:$0xf]
    %v57 = vld [vmem:[#allocation5 + $0x2c] sm:$0xf]
    %v58 = vld [vmem:[#allocation5 + $0x30] sm:$0xf]
    %v59 = vld [vmem:[#allocation5 + $0x34] sm:$0xf]
    %v60 = vld [vmem:[#allocation5 + $0x38] sm:$0xf]
    %v61 = vld [vmem:[#allocation5 + $0x3c] sm:$0xf]
    %v64 = vunpack.c.l.b16 %v44
    %v65 = vunpack.c.l.b16 %v45
    %v66 = vpack.c.b16 %v65, %v64
    %v84 = vunpack.c.l.b16 %v46
    %v85 = vunpack.c.l.b16 %v47
    %v86 = vunpack.c.l.b16 %v48
    %v87 = vunpack.c.l.b16 %v49
    %v88 = vunpack.c.l.b16 %v50
    %v89 = vunpack.c.l.b16 %v51
    %v90 = vunpack.c.l.b16 %v52
    %v91 = vunpack.c.l.b16 %v53
    %v92 = vunpack.c.l.b16 %v54
    %v93 = vunpack.c.l.b16 %v55
    %v94 = vunpack.c.l.b16 %v56
    %v95 = vunpack.c.l.b16 %v57
    %v96 = vunpack.c.l.b16 %v58
    %v97 = vunpack.c.l.b16 %v59
    %v98 = vunpack.c.l.b16 %v60
    %v99 = vunpack.c.l.b16 %v61
    %v100 = vpack.c.b16 %v85, %v84
    %v101 = vpack.c.b16 %v87, %v86
    %v102 = vpack.c.b16 %v89, %v88
    %v103 = vpack.c.b16 %v91, %v90
    %v104 = vpack.c.b16 %v93, %v92
    %v105 = vpack.c.b16 %v95, %v94
    %v106 = vpack.c.b16 %v97, %v96
    %v107 = vpack.c.b16 %v99, %v98
    %116 = vmatpush.bf16.msra.mxu0 %v107
    %117 = vmatpush.bf16.msra.mxu0 %v106
    %118 = vmatpush.bf16.msra.mxu0 %v105
    %119 = vmatpush.bf16.msra.mxu0 %v104
    %120 = vmatpush.bf16.msra.mxu0 %v103
    %121 = vmatpush.bf16.msra.mxu0 %v102
    %122 = vmatpush.bf16.msra.mxu0 %v101
    %123 = vmatpush.bf16.msra.mxu0 %v100
    %124 = vmatmul.bf16.gmra.mxu0 %v66
    %v125 = vpop.f32.mrf.mxu0
    %v126 = vadd.f32 0.0, %v125
    %v127 = vpop.f32.mrf.mxu0
    %v128 = vadd.f32 0.0, %v127
    %129 = vdwg.mxu0
    %v130 = vpack.c.bf16 %v126, %v126
    %v131 = vpack.c.bf16 %v128, %v128
    %132 = vst [vmem:[#allocation7] sm:$0xf] %v130
    %133 = vst [vmem:[#allocation7 + $0x4] sm:$0xf] %v131
    // Predicated region
    $region18: #{tpu_custom_call.1} parent=1 // pred_check
      _
    $region19: #{tpu_custom_call.1} parent=1 // pred_check_branch
      %135 = sbr.rel (0) target = $region21
    $region20: #{tpu_custom_call.1} parent=1 // pred_region
      %137 = vsyncadd [#allocation4], 0
      %s138 = sshll.u32 [#allocation7], 4
      %s139 = int_to_ptr.vmem [resolvable:$true] %s138
      %s140 = sshll.u32 %s2, 4
      %s141 = int_to_ptr.hbm [resolvable:$true] %s140
      %146 = dma.vmem_to_hbm [thread:$0]  %s139, 128, %s141, [#allocation4], 64, 64, 4
    $region21: #{tpu_custom_call.1} parent=1 // pred_fallthru
      _
    // Predicated region
    $region22: #{tpu_custom_call.1} parent=1 // pred_check
      _
    $region23: #{tpu_custom_call.1} parent=1 // pred_check_branch
      %148 = sbr.rel (0) target = $region25
    $region24: #{tpu_custom_call.1} parent=1 // pred_region
      %150 = dma.done [#allocation4], 128
    $region25: #{tpu_custom_call.1} parent=1 // pred_fallthru
      _
    %151 = vsyncpa [#allocation3], 1
    %152 = vsyncpa [#allocation6], 1
    %153 = vsyncpa [#allocation4], 1

</llo_original>
